<compile_context>
chip_gen: v7x
topology: tpu7x:2x2x1
jax: 0.10.0
libtpu: 0.0.40
codegen_flags: <defaults>
</compile_context>

<pallas_src>
import jax
import jax.numpy as jnp
from jax.experimental import pallas as pl
from jax.experimental.pallas import tpu as pltpu


def _round_up(x, m):
    return ((x + m - 1) // m) * m


def _round_down(x, m):
    return (x // m) * m


# Number of (B, tn)-shaped f32 intermediates the single-pass kernel keeps live
# (x cast to f32 and the centered diff used for the variance).
_F32_TEMPS = 2


def _hw_config():
    """Per-generation VMEM budgets and TensorCore-split policy."""
    vmem_cap = None
    try:
        vmem_cap = int(getattr(pltpu.get_tpu_info(), "vmem_capacity_bytes", 0)) or None
    except Exception:
        vmem_cap = None
    if vmem_cap is not None and vmem_cap > 96 * 1024 * 1024:
        # v5e / v6e: 128 MiB VMEM, single TensorCore -> big blocks, no 2-way split.
        return dict(block_budget=16 * 1024 * 1024,
                    vmem_limit=64 * 1024 * 1024,
                    two_tc=False)
    # v7x-like (64 MiB per TC, 2 TCs) or unknown: budget per-TC, keep the split.
    return dict(block_budget=8 * 1024 * 1024,
                vmem_limit=32 * 1024 * 1024,
                two_tc=True)


def _make_bn_kernel(eps, n_batch):
    inv_b = 1.0 / float(n_batch)
    # torch's input.var(0) default is unbiased (ddof=1); for B == 1 torch
    # yields NaN and we reproduce that instead of clamping.
    inv_denom = (1.0 / float(n_batch - 1)) if n_batch > 1 else float("nan")

    def bn_kernel(x_ref, gamma_ref, beta_ref, o_ref):
        # x_ref: (B, tn)   gamma_ref/beta_ref: (1, tn)   o_ref: (B, tn)
        xf = x_ref[...].astype(jnp.float32)
        mean = jnp.sum(xf, axis=0, keepdims=True) * inv_b            # (1, tn)
        diff = xf - mean                                             # (B, tn)
        var = jnp.sum(diff * diff, axis=0, keepdims=True) * inv_denom
        inv_std = jax.lax.rsqrt(var + eps)                           # (1, tn)
        # Per-lane affine: out = a*x + b, a = gamma*inv_std, b = beta - a*mean.
        a = gamma_ref[...].astype(jnp.float32) * inv_std             # (1, tn)
        b = beta_ref[...].astype(jnp.float32) - a * mean             # (1, tn)
        o_ref[...] = (a * xf + b).astype(o_ref.dtype)

    return bn_kernel


def _choose_tile(n_batch, n_neurons, itemsize, cfg):
    """Lane tile (multiple of 128) for the single-pass kernel, or None if even
    a (B, 128) block does not fit the VMEM block budget."""
    n_cols128 = _round_up(n_neurons, 128)
    # Per lane-column VMEM: double-buffered x-in and out blocks (input dtype)
    # plus the in-kernel f32 intermediates.
    bytes_per_col = n_batch * (4 * itemsize + _F32_TEMPS * 4)
    max_tn_vmem = _round_down(cfg["block_budget"] // bytes_per_col, 128)
    if max_tn_vmem < 128:
        return None
    # Aim for ~2 MiB of x per block so the per-step grid overhead amortizes at
    # the HBM roofline and output stores stay wide, unmasked vst.
    target_x_bytes = 2 * 1024 * 1024
    tn_target = _round_up(max(128, -(-target_x_bytes // (n_batch * itemsize))), 128)
    tn = max(128, min(n_cols128, max_tn_vmem, tn_target))
    if cfg["two_tc"] and pl.cdiv(n_neurons, tn) < 2:
        # v7x: split the neuron grid across the 2 TensorCores, but only if the
        # halved x block still holds >= ~1 MiB.
        half = _round_down(n_cols128 // 2, 128)
        if half >= 128 and n_batch * half * itemsize >= 1024 * 1024:
            tn = min(tn, half)
    return tn


def _two_pass_forward(x, gamma, beta, eps, cfg, tile_override=None):
    """Batch-tiled two-pass path for batches too large for whole-batch blocks."""
    B, N = x.shape
    itemsize = jnp.dtype(x.dtype).itemsize

    if tile_override is not None:
        tb, tn = tile_override
    else:
        tn = min(_round_up(N, 128), 512)
        bytes_per_row = tn * (4 * itemsize + _F32_TEMPS * 4)
        tb = _round_down(max(8, cfg["block_budget"] // bytes_per_row), 8)
        tb = max(8, min(tb, _round_up(B, 8)))
    n_b = pl.cdiv(B, tb)
    n_n = pl.cdiv(N, tn)

    inv_b = 1.0 / float(B)
    inv_denom = (1.0 / float(B - 1)) if B > 1 else float("nan")

    # ---- pass 1: per-neuron sum and sum-of-squares (reduce over batch tiles).
    def stats_kernel(x_ref, sum_ref, sq_ref):
        b = pl.program_id(1)

        @pl.when(b == 0)
        def _():
            sum_ref[...] = jnp.zeros_like(sum_ref)
            sq_ref[...] = jnp.zeros_like(sq_ref)

        xf = x_ref[...].astype(jnp.float32)
        # Mask batch-tail rows of the edge block out of the reduction.
        row = jax.lax.broadcasted_iota(jnp.int32, xf.shape, 0) + b * tb
        xf = jnp.where(row < B, xf, 0.0)
        sum_ref[...] += jnp.sum(xf, axis=0, keepdims=True)
        sq_ref[...] += jnp.sum(xf * xf, axis=0, keepdims=True)

    s, sq = pl.pallas_call(
        stats_kernel,
        out_shape=(jax.ShapeDtypeStruct((1, N), jnp.float32),
                   jax.ShapeDtypeStruct((1, N), jnp.float32)),
        grid_spec=pltpu.PrefetchScalarGridSpec(
            num_scalar_prefetch=0,
            grid=(n_n, n_b),
            in_specs=[pl.BlockSpec((tb, tn), lambda j, b: (b, j))],
            out_specs=[pl.BlockSpec((1, tn), lambda j, b: (0, j)),
                       pl.BlockSpec((1, tn), lambda j, b: (0, j))],
        ),
        compiler_params=pltpu.CompilerParams(
            dimension_semantics=("parallel", "arbitrary"),
            vmem_limit_bytes=cfg["vmem_limit"]),
    )(x)

    # Per-neuron affine coefficients (tiny, N-sized) in plain JAX.
    mean = s * inv_b
    var = jnp.maximum((sq - s * s * inv_b) * inv_denom, 0.0)
    a2d = gamma.reshape(1, N).astype(jnp.float32) * jax.lax.rsqrt(var + eps)
    b2d = beta.reshape(1, N).astype(jnp.float32) - a2d * mean

    # ---- pass 2: streaming affine normalize.
    def norm_kernel(x_ref, a_ref, b_ref, o_ref):
        o_ref[...] = (a_ref[...] * x_ref[...].astype(jnp.float32)
                      + b_ref[...]).astype(o_ref.dtype)

    return pl.pallas_call(
        norm_kernel,
        out_shape=jax.ShapeDtypeStruct((B, N), x.dtype),
        grid_spec=pltpu.PrefetchScalarGridSpec(
            num_scalar_prefetch=0,
            grid=(n_n, n_b),
            in_specs=[pl.BlockSpec((tb, tn), lambda j, b: (b, j)),
                      pl.BlockSpec((1, tn), lambda j, b: (0, j)),
                      pl.BlockSpec((1, tn), lambda j, b: (0, j))],
            out_specs=pl.BlockSpec((tb, tn), lambda j, b: (b, j)),
        ),
        compiler_params=pltpu.CompilerParams(
            dimension_semantics=("parallel", "parallel"),
            vmem_limit_bytes=cfg["vmem_limit"]),
    )(x, a2d, b2d)


def custom_batchnorm_forward(x, gamma, beta, eps=1e-5, *,
                             force_two_pass=False, _two_pass_tiles=None):
    """Batch-normalize x with per-neuron scale/shift (forward of the module).

    Args:
      x:     (n_batch, n_neurons) or (n_neurons,) array
      gamma: (n_neurons,) scale
      beta:  (n_neurons,) shift
    Returns:
      (n_batch, n_neurons) batch-normalized output (same dtype as x).
    """
    if x.ndim == 1:
        x = x[None, :]
    elif x.ndim > 2:
        raise ValueError(
            f"Expected 2D input. Instead, got {x.ndim}D input with shape of {x.shape}.")
    if x.shape[1] != gamma.shape[0]:
        raise ValueError(
            f"Expected input of shape batch_size x {gamma.shape[0]}. "
            f"Instead, got input with shape of {x.shape}.")

    B, N = x.shape
    itemsize = jnp.dtype(x.dtype).itemsize
    cfg = _hw_config()

    tn = None if force_two_pass else _choose_tile(B, N, itemsize, cfg)
    if tn is None:
        # Whole-batch blocks do not fit the VMEM budget -> two-pass fallback.
        return _two_pass_forward(x, gamma, beta, eps, cfg,
                                 tile_override=_two_pass_tiles)

    n_steps = pl.cdiv(N, tn)
    # Only gamma/beta (tiny) are padded so their (1, tn) blocks are always
    # full; x / out stay at (B, N) and Pallas masks the edge block's stores
    # (per-lane statistics cannot leak across columns).  gamma/beta are kept
    # as per-step (1, tn) blocks: a whole-row resident block would need
    # in-kernel dynamic slicing for a negligible descriptor saving.
    n_cols = n_steps * tn
    pad = n_cols - N
    gamma2d = jnp.pad(gamma, (0, pad)).reshape(1, n_cols)
    beta2d = jnp.pad(beta, (0, pad)).reshape(1, n_cols)

    kernel = _make_bn_kernel(eps, B)
    return pl.pallas_call(
        kernel,
        out_shape=jax.ShapeDtypeStruct((B, N), x.dtype),
        grid_spec=pltpu.PrefetchScalarGridSpec(
            num_scalar_prefetch=0,
            grid=(n_steps,),
            in_specs=[
                pl.BlockSpec((B, tn), lambda j: (0, j)),
                pl.BlockSpec((1, tn), lambda j: (0, j)),
                pl.BlockSpec((1, tn), lambda j: (0, j)),
            ],
            out_specs=pl.BlockSpec((B, tn), lambda j: (0, j)),
        ),
        compiler_params=pltpu.CompilerParams(
            dimension_semantics=("parallel",),
            vmem_limit_bytes=cfg["vmem_limit"]),
    )(x, gamma2d, beta2d)


def _reference(x, gamma, beta, eps=1e-5):
    # Pure-JAX reference matching torch semantics (unbiased var, ddof=1).
    mean = jnp.mean(x, axis=0)
    var = jnp.var(x, axis=0, ddof=1)
    x_hat = (x - mean) / jnp.sqrt(var + eps)
    return gamma * x_hat + beta


if __name__ == "__main__":
    key = jax.random.PRNGKey(0)
    k1, k2, k3 = jax.random.split(key, 3)

    # Case 1: ragged neuron count (N=32 < 128), single-pass path, masked edge store.
    n_batch, n_neurons = 8, 32
    x = jax.random.normal(k1, (n_batch, n_neurons), dtype=jnp.float32)
    gamma = jnp.ones((n_neurons,), dtype=jnp.float32)    # matches module __init__
    beta = jnp.zeros((n_neurons,), dtype=jnp.float32)
    out = jax.block_until_ready(custom_batchnorm_forward(x, gamma, beta, eps=1e-5))
    ref = _reference(x, gamma, beta, eps=1e-5)
    assert out.shape == (n_batch, n_neurons)
    assert jnp.allclose(out, ref, atol=1e-5, rtol=1e-5), "case 1 mismatch vs reference"

    # Case 2: ragged N=200 with non-trivial gamma/beta (single-pass path, tn=256).
    n_batch2, n_neurons2 = 8, 200
    x2 = jax.random.normal(k2, (n_batch2, n_neurons2), dtype=jnp.float32)
    gamma2 = jnp.linspace(0.5, 1.5, n_neurons2, dtype=jnp.float32)
    beta2 = jnp.linspace(-0.1, 0.1, n_neurons2, dtype=jnp.float32)
    out2 = jax.block_until_ready(custom_batchnorm_forward(x2, gamma2, beta2, eps=1e-5))
    ref2 = _reference(x2, gamma2, beta2, eps=1e-5)
    assert out2.shape == (n_batch2, n_neurons2)
    assert jnp.allclose(out2, ref2, atol=1e-5, rtol=1e-5), "case 2 mismatch vs reference"

    # Case 3: force the batch-tiled two-pass fallback with small tiles so the
    # batch-accumulation grid (3 batch blocks x 2 neuron blocks) is exercised.
    n_batch3, n_neurons3 = 24, 200
    x3 = jax.random.normal(k3, (n_batch3, n_neurons3), dtype=jnp.float32)
    gamma3 = jnp.linspace(0.8, 1.2, n_neurons3, dtype=jnp.float32)
    beta3 = jnp.linspace(-0.2, 0.2, n_neurons3, dtype=jnp.float32)
    out3 = jax.block_until_ready(
        custom_batchnorm_forward(x3, gamma3, beta3, eps=1e-5,
                                 force_two_pass=True, _two_pass_tiles=(8, 128)))
    ref3 = _reference(x3, gamma3, beta3, eps=1e-5)
    assert out3.shape == (n_batch3, n_neurons3)
    assert jnp.allclose(out3, ref3, atol=1e-4, rtol=1e-4), "case 3 mismatch vs reference"

    print("KERNEL_OK")
</pallas_src>

<mosaic_0001>
module attributes {stable_mosaic.version = 11 : i64} {
  func.func @bn_kernel(%arg0: i32, %arg1: memref<8x128xf32, #tpu.memory_space<vmem>>, %arg2: memref<1x128xf32, #tpu.memory_space<vmem>>, %arg3: memref<1x128xf32, #tpu.memory_space<vmem>>, %arg4: memref<8x128xf32, #tpu.memory_space<vmem>>) attributes {dimension_semantics = [#tpu.dimension_semantics<parallel>], iteration_bounds = array<i64: 1>, scalar_prefetch = 0 : i64, scratch_operands = 0 : i64, tpu.core_type = #tpu.core_type<tc>, window_params = [{transform_indices = @transform_0, window_bounds = array<i64: 8, 128>}, {transform_indices = @transform_1, window_bounds = array<i64: 1, 128>}, {transform_indices = @transform_2, window_bounds = array<i64: 1, 128>}, {transform_indices = @transform_3, window_bounds = array<i64: 8, 128>}]} {
    %c0 = arith.constant 0 : index
    %c0_0 = arith.constant 0 : index
    %0 = vector.load %arg1[%c0, %c0_0] : memref<8x128xf32, #tpu.memory_space<vmem>>, vector<8x128xf32>
    %cst = arith.constant dense<0.000000e+00> : vector<128xf32>
    %1 = vector.multi_reduction <add>, %0, %cst [0] : vector<8x128xf32> to vector<128xf32>
    %2 = vector.shape_cast %1 : vector<128xf32> to vector<1x128xf32>
    %cst_1 = arith.constant 1.250000e-01 : f32
    %3 = vector.broadcast %cst_1 : f32 to vector<1x128xf32>
    %4 = arith.mulf %2, %3 : vector<1x128xf32>
    %5 = vector.broadcast %4 : vector<1x128xf32> to vector<8x128xf32>
    %6 = arith.subf %0, %5 : vector<8x128xf32>
    %7 = arith.mulf %6, %6 : vector<8x128xf32>
    %cst_2 = arith.constant dense<0.000000e+00> : vector<128xf32>
    %8 = vector.multi_reduction <add>, %7, %cst_2 [0] : vector<8x128xf32> to vector<128xf32>
    %9 = vector.shape_cast %8 : vector<128xf32> to vector<1x128xf32>
    %cst_3 = arith.constant 0.142857149 : f32
    %10 = vector.broadcast %cst_3 : f32 to vector<1x128xf32>
    %11 = arith.mulf %9, %10 : vector<1x128xf32>
    %cst_4 = arith.constant 9.99999974E-6 : f32
    %12 = vector.broadcast %cst_4 : f32 to vector<1x128xf32>
    %13 = arith.addf %11, %12 : vector<1x128xf32>
    %14 = math.rsqrt %13 : vector<1x128xf32>
    %c0_5 = arith.constant 0 : index
    %c0_6 = arith.constant 0 : index
    %15 = vector.load %arg2[%c0_5, %c0_6] : memref<1x128xf32, #tpu.memory_space<vmem>>, vector<1x128xf32>
    %16 = arith.mulf %15, %14 : vector<1x128xf32>
    %c0_7 = arith.constant 0 : index
    %c0_8 = arith.constant 0 : index
    %17 = vector.load %arg3[%c0_7, %c0_8] : memref<1x128xf32, #tpu.memory_space<vmem>>, vector<1x128xf32>
    %18 = arith.mulf %16, %4 : vector<1x128xf32>
    %19 = arith.subf %17, %18 : vector<1x128xf32>
    %20 = vector.broadcast %16 : vector<1x128xf32> to vector<8x128xf32>
    %21 = arith.mulf %20, %0 : vector<8x128xf32>
    %22 = vector.broadcast %19 : vector<1x128xf32> to vector<8x128xf32>
    %23 = arith.addf %21, %22 : vector<8x128xf32>
    %c0_9 = arith.constant 0 : index
    %c0_10 = arith.constant 0 : index
    %24 = vector.load %arg4[%c0_9, %c0_10] : memref<8x128xf32, #tpu.memory_space<vmem>>, vector<8x128xf32>
    tpu.vector_store %arg4[%c0_9, %c0_10], %23 {strides = array<i32>} : memref<8x128xf32, #tpu.memory_space<vmem>>, vector<8x128xf32>,
    return
  }
  func.func @transform_0(%arg0: i32) -> (i32, i32) {
    %c0_i32 = arith.constant 0 : i32
    %c0_i32_0 = arith.constant 0 : i32
    return %c0_i32, %arg0 : i32, i32
  }
  func.func @transform_1(%arg0: i32) -> (i32, i32) {
    %c0_i32 = arith.constant 0 : i32
    %c0_i32_0 = arith.constant 0 : i32
    return %c0_i32, %arg0 : i32, i32
  }
  func.func @transform_2(%arg0: i32) -> (i32, i32) {
    %c0_i32 = arith.constant 0 : i32
    %c0_i32_0 = arith.constant 0 : i32
    return %c0_i32, %arg0 : i32, i32
  }
  func.func @transform_3(%arg0: i32) -> (i32, i32) {
    %c0_i32 = arith.constant 0 : i32
    %c0_i32_0 = arith.constant 0 : i32
    return %c0_i32, %arg0 : i32, i32
  }
}

</mosaic_0001>

<llo_original>
// kernel: tpu_custom_call.1
$region0: #{tpu_custom_call.1}
  #allocation0 [shape = 'u32[]', space=smem, size = 0x4, offset = 0x4, fixed_abs, tag = 'smem constant byte address 0x4 - core index']
  #allocation1 [shape = 'u32[144,128]{1,0:T(1,128)}', space=vmem, size = 0x12000, scoped, tag = 'internal scratch']
  %s0 = inlined_call_operand.hbm [shape: f32[8,32], index: 0, kind: input, shape index: {}]
  %s1 = inlined_call_operand.vmem [shape: f32[1,128], index: 1, kind: input, shape index: {}]
  %s2 = inlined_call_operand.vmem [shape: f32[1,128], index: 2, kind: input, shape index: {}]
  %s3 = inlined_call_operand.hbm [shape: f32[8,32], index: 3, kind: output, shape index: {}]
  %s4 = sld [smem:[#allocation0]]
  $region26: #{tpu_custom_call.1} parent=0
    _
  %s6 = ssub.s32 1, %s4
  %s7 = scalar_select 0, %s6, %s4
  $region1: #{tpu_custom_call.1} parent=0
    #allocation2 [shape = 'u8[4096]{0}', space=vmem, size = 0x1000, scoped, tag = 'input window, operand 0, single buffered']
    #allocation3 [shape = 's32[1]{0}', space=sflag, size = 0x4, scoped, tag = 'scoped memory for tpu_custom_call.1']
    #allocation4 [shape = 's32[1]{0}', space=sflag, size = 0x4, scoped, tag = 'scoped memory for tpu_custom_call.1']
    #allocation5 [shape = 'u8[4096]{0}', space=vmem, size = 0x1000, scoped, tag = 'output window, operand 0, single buffered']
    %8 = vsyncpa [#allocation3], 0
    %9 = vsyncpa [#allocation4], 0
    // Predicated region
    $region2: #{tpu_custom_call.1} parent=1 // pred_check
      _
    $region3: #{tpu_custom_call.1} parent=1 // pred_check_branch
      %11 = sbr.rel (0) target = $region5
    $region4: #{tpu_custom_call.1} parent=1 // pred_region
      %s13 = ssub.s32 128, 128
      %14 = vsyncadd [#allocation3], %s13
      %s16 = sshll.u32 [#allocation2], 4
      %s17 = int_to_ptr.vmem [resolvable:$true] %s16
      %19 = dma.hbm_to_vmem [thread:$0]  %s0, 128, %s17, [#allocation3]
    $region5: #{tpu_custom_call.1} parent=1 // pred_fallthru
      _
    // Predicated region
    $region6: #{tpu_custom_call.1} parent=1 // pred_check
      _
    $region7: #{tpu_custom_call.1} parent=1 // pred_check_branch
      %21 = sbr.rel (0) target = $region9
    $region8: #{tpu_custom_call.1} parent=1 // pred_region
      _
    $region9: #{tpu_custom_call.1} parent=1 // pred_fallthru
      _
    // Predicated region
    $region10: #{tpu_custom_call.1} parent=1 // pred_check
      _
    $region11: #{tpu_custom_call.1} parent=1 // pred_check_branch
      %23 = sbr.rel (0) target = $region13
    $region12: #{tpu_custom_call.1} parent=1 // pred_region
      _
    $region13: #{tpu_custom_call.1} parent=1 // pred_fallthru
      _
    // Predicated region
    $region14: #{tpu_custom_call.1} parent=1 // pred_check
      _
    $region15: #{tpu_custom_call.1} parent=1 // pred_check_branch
      %25 = sbr.rel (0) target = $region17
    $region16: #{tpu_custom_call.1} parent=1 // pred_region
      %26 = dma.done [#allocation3], 128
    $region17: #{tpu_custom_call.1} parent=1 // pred_fallthru
      _
    %v27 = vld [vmem:[#allocation2] sm:$0xff]
    %v28 = vrot.slane %v27, 4
    %v29 = vadd.f32 %v27, %v28
    %v30 = vrot.slane %v29, 2
    %v31 = vadd.f32 %v29, %v30
    %v32 = vrot.slane %v31, 1
    %v33 = vadd.f32 %v31, %v32
    %v34 = vmul.f32 %v33, 0.125
    %v35 = vsub.f32 %v27, %v34
    %v36 = vmul.f32 %v35, %v35
    %v37 = vrot.slane %v36, 4
    %v38 = vadd.f32 %v36, %v37
    %v39 = vrot.slane %v38, 2
    %v40 = vadd.f32 %v38, %v39
    %v41 = vrot.slane %v40, 1
    %v42 = vadd.f32 %v40, %v41
    %v43 = vmul.f32 %v42, 0.14285715
    %v44 = vadd.f32 %v43, 1e-05
    %v45 = vrsqrt.pop %v44
    %v46 = vld [vmem:[%s1] sm:$0x1]
    %v47 = vmul.f32 %v46, %v45
    %v48 = vld [vmem:[%s2] sm:$0x1]
    %v49 = vmul.f32 %v47, %v34
    %v50 = vsub.f32 %v48, %v49
    %v52 = vlaneseq
    %v53 = vshrl.u32 %v52, 7
    %v54 = vsub.s32 0, %v53
    %v55 = vrot.slane %v47, %v54
    %v57 = vmul.f32 %v55, %v27
    %v59 = vlaneseq
    %v60 = vshrl.u32 %v59, 7
    %v61 = vsub.s32 0, %v60
    %v62 = vrot.slane %v50, %v61
    %v64 = vadd.f32 %v57, %v62
    %65 = vst [vmem:[#allocation5] sm:$0xff] %v64
    // Predicated region
    $region18: #{tpu_custom_call.1} parent=1 // pred_check
      _
    $region19: #{tpu_custom_call.1} parent=1 // pred_check_branch
      %67 = sbr.rel (0) target = $region21
    $region20: #{tpu_custom_call.1} parent=1 // pred_region
      %s69 = ssub.s32 128, 128
      %70 = vsyncadd [#allocation4], %s69
      %s72 = sshll.u32 [#allocation5], 4
      %s73 = int_to_ptr.vmem [resolvable:$true] %s72
      %75 = dma.vmem_to_hbm [thread:$0]  %s73, 128, %s3, [#allocation4]
    $region21: #{tpu_custom_call.1} parent=1 // pred_fallthru
      _
    // Predicated region
    $region22: #{tpu_custom_call.1} parent=1 // pred_check
      _
    $region23: #{tpu_custom_call.1} parent=1 // pred_check_branch
      %77 = sbr.rel (0) target = $region25
    $region24: #{tpu_custom_call.1} parent=1 // pred_region
      %78 = dma.done [#allocation4], 128
    $region25: #{tpu_custom_call.1} parent=1 // pred_fallthru
      _
    %79 = vsyncpa [#allocation3], 1
    %80 = vsyncpa [#allocation4], 1

</llo_original>
